<compile_context>
chip_gen: v6e
topology: v6e:2x2x1
jax: 0.10.0
libtpu: 0.0.40
codegen_flags: <defaults>
</compile_context>

<pallas_src>
import jax
import jax.numpy as jnp
import numpy as np
from jax import lax
from jax.experimental import pallas as pl
from jax.experimental.pallas import tpu as pltpu

# Plain Python float so it folds into the kernel as a literal.
EPS = float(np.finfo(np.float32).eps)  # == torch.finfo(torch.float32).eps


def _cln_kernel(x_ref, gain_ref, bias_ref, tri_ref, o_ref, carry_ref):
    # x_ref/o_ref : (1, C, TT)  with TT = n_chunks * TC (lane-aligned)
    # gain/bias   : (1, C, 1)
    # tri_ref     : (TC, TC) f32 constant input, tri[s, t] = 1 if s <= t
    # carry_ref   : (B, 2, 1) f32 persistent scratch: per-batch running
    #               [cum_sum, cum_pow_sum]
    b = pl.program_id(0)
    t_blk = pl.program_id(1)
    C = x_ref.shape[1]
    TT = x_ref.shape[2]
    TC = tri_ref.shape[0]
    n_chunks = TT // TC

    @pl.when(t_blk == 0)
    def _init():
        # Reset only this batch's running prefix (robust to any cross-batch
        # interleaving / megacore partitioning).
        carry_ref[b] = jnp.zeros((2, 1), jnp.float32)

    gain = gain_ref[0].astype(jnp.float32)      # (C, 1)
    bias = bias_ref[0].astype(jnp.float32)      # (C, 1)
    tri = tri_ref[...]                          # (TC, TC)
    base_t = t_blk * TT

    def chunk_body(c, carry):
        start = pl.multiple_of(c * TC, 128)
        x = x_ref[0, :, pl.ds(start, TC)].astype(jnp.float32)          # (C, TC)

        # Per-time-step channel stats; both cumulative sums ride one MXU matmul.
        step_sum = jnp.sum(x, axis=0, keepdims=True)                    # (1, TC)
        step_pow = jnp.sum(x * x, axis=0, keepdims=True)                # (1, TC)
        stats = jnp.concatenate([step_sum, step_pow], axis=0)           # (2, TC)

        # Inclusive prefix sum within the chunk + carried prefix.
        cum = jnp.dot(stats, tri, preferred_element_type=jnp.float32) + carry
        new_carry = cum[:, TC - 1:TC]            # chunk total == last column

        cum_sum = cum[0:1, :]
        cum_pow = cum[1:2, :]

        # entry_cnt = C * (global_t + 1); exact divide shared by mean and var.
        pos = lax.broadcasted_iota(jnp.int32, (1, TC), 1) + (base_t + start + 1)
        inv_cnt = 1.0 / (pos.astype(jnp.float32) * float(C))            # (1, TC)

        cum_mean = cum_sum * inv_cnt
        cum_var = (cum_pow - 2.0 * cum_mean * cum_sum) * inv_cnt + cum_mean * cum_mean
        inv_std = lax.rsqrt(cum_var + EPS)                               # (1, TC)

        y = (x - cum_mean) * inv_std                                     # (C, TC)
        o_ref[0, :, pl.ds(start, TC)] = (y * gain + bias).astype(o_ref.dtype)
        return new_carry

    carry0 = carry_ref[b]
    carry_ref[b] = lax.fori_loop(0, n_chunks, chunk_body, carry0, unroll=True)


def _round_up(n, m):
    return ((n + m - 1) // m) * m


def cln_forward(x, gain, bias, *, max_chunk=512, max_chunks_per_step=4):
    """x: (B, C, T); gain, bias: (1, C, 1). Returns (B, C, T) in x.dtype."""
    B, C, T = x.shape
    assert gain.shape == (1, C, 1) and bias.shape == (1, C, 1)

    # Inner chunk: lane-aligned (multiple of 128), capped at 512 so the
    # triangular prefix matrix never exceeds 1 MiB.  No full-T fallback.
    tc = min(_round_up(max(T, 1), 128), max(128, (max_chunk // 128) * 128))
    t_pad = _round_up(T, tc)
    n_chunks_total = t_pad // tc

    # Amortize per-grid-step overhead: carry several chunks per DMA tile and
    # loop over them inside the kernel against the fixed (tc, tc) tri.
    itemsize = jnp.dtype(x.dtype).itemsize
    budget = 40 << 20  # v7x-safe working-set budget

    def vmem_est(cps):
        tt = cps * tc
        io = 2 * C * tt * 2 * itemsize          # double-buffered x + out blocks
        return io + 2 * tc * tc * 4 + (2 << 20)  # tri (dbl-buffered) + misc

    cps = 1
    for d in range(1, n_chunks_total + 1):
        if (n_chunks_total % d == 0 and d <= max_chunks_per_step
                and vmem_est(d) <= budget):
            cps = d
    tt = cps * tc
    n_t = n_chunks_total // cps

    est = vmem_est(cps)
    vmem_limit = int(min(max(min(2 * est, 48 << 20), est + (4 << 20), 32 << 20),
                         96 << 20))

    # Pad T with zeros to a multiple of the chunk (zeros do not perturb the
    # cumulative statistics of real positions); slice the tail off afterwards.
    xp = x if t_pad == T else jnp.pad(x, ((0, 0), (0, 0), (0, t_pad - T)))

    # Constant upper-triangular ones matrix (tri[s, t] = 1 if s <= t), built on
    # the host once and DMA'd as a resident input block.
    tri = jnp.asarray(np.triu(np.ones((tc, tc), np.float32)))

    out = pl.pallas_call(
        _cln_kernel,
        out_shape=jax.ShapeDtypeStruct((B, C, t_pad), x.dtype),
        grid_spec=pltpu.PrefetchScalarGridSpec(
            num_scalar_prefetch=0,
            grid=(B, n_t),
            in_specs=[
                pl.BlockSpec((1, C, tt), lambda b, t: (b, 0, t)),
                pl.BlockSpec((1, C, 1), lambda b, t: (0, 0, 0)),
                pl.BlockSpec((1, C, 1), lambda b, t: (0, 0, 0)),
                pl.BlockSpec((tc, tc), lambda b, t: (0, 0)),
            ],
            out_specs=pl.BlockSpec((1, C, tt), lambda b, t: (b, 0, t)),
            scratch_shapes=[
                pltpu.VMEM((B, 2, 1), jnp.float32),  # per-batch running prefix
            ],
        ),
        compiler_params=pltpu.CompilerParams(
            dimension_semantics=("parallel", "arbitrary"),
            vmem_limit_bytes=vmem_limit),
    )(xp, gain, bias, tri)

    return out if t_pad == T else out[:, :, :T]


def cln_reference(x, gain, bias):
    """Pure-JAX reference matching the PyTorch forward (stats in f32)."""
    B, C, T = x.shape
    xf = x.astype(jnp.float32)
    step_sum = xf.sum(axis=1)                     # (B, T)
    step_pow_sum = (xf ** 2).sum(axis=1)          # (B, T)
    cum_sum = jnp.cumsum(step_sum, axis=1)
    cum_pow_sum = jnp.cumsum(step_pow_sum, axis=1)
    entry_cnt = jnp.arange(C, C * (T + 1), C, dtype=jnp.float32)[None, :]
    cum_mean = cum_sum / entry_cnt
    cum_var = (cum_pow_sum - 2 * cum_mean * cum_sum) / entry_cnt + cum_mean ** 2
    cum_std = jnp.sqrt(cum_var + EPS)
    y = (xf - cum_mean[:, None, :]) / cum_std[:, None, :]
    out = y * gain.astype(jnp.float32) + bias.astype(jnp.float32)
    return out.astype(x.dtype)


if __name__ == "__main__":
    key = jax.random.PRNGKey(0)

    # Small demo matching the module convention (batch, channel, time).
    B, C, T = 2, 4, 16
    x = jax.random.normal(key, (B, C, T), dtype=jnp.float32)
    gain = jnp.ones((1, C, 1), dtype=jnp.float32)    # nn.Parameter(torch.ones(1, C, 1))
    bias = jnp.zeros((1, C, 1), dtype=jnp.float32)   # nn.Parameter(torch.zeros(1, C, 1))
    out = jax.block_until_ready(cln_forward(x, gain, bias))
    assert out.shape == (B, C, T)
    assert jnp.allclose(out, cln_reference(x, gain, bias), atol=1e-4, rtol=1e-4)

    # Ragged T (padding path) + multi-chunk inner loop + carried prefix across
    # grid steps: T=4000 -> padded to 4096, chunk 512, 4 chunks/step, 2 steps.
    k1, k2, k3 = jax.random.split(key, 3)
    B2, C2, T2 = 2, 8, 4000
    x2 = jax.random.normal(k1, (B2, C2, T2), dtype=jnp.float32)
    gain2 = 1.0 + 0.1 * jax.random.normal(k2, (1, C2, 1), dtype=jnp.float32)
    bias2 = jnp.full((1, C2, 1), 0.05, dtype=jnp.float32)
    out2 = jax.block_until_ready(cln_forward(x2, gain2, bias2))
    assert jnp.allclose(out2, cln_reference(x2, gain2, bias2), atol=2e-3, rtol=2e-3)

    # bf16 I/O path (statistics stay f32 inside the kernel).
    B3, C3, T3 = 2, 16, 1024
    x3 = jax.random.normal(k3, (B3, C3, T3), dtype=jnp.bfloat16)
    gain3 = jnp.ones((1, C3, 1), dtype=jnp.bfloat16)
    bias3 = jnp.zeros((1, C3, 1), dtype=jnp.bfloat16)
    out3 = jax.block_until_ready(cln_forward(x3, gain3, bias3))
    ref3 = cln_reference(x3, gain3, bias3).astype(jnp.float32)
    assert jnp.allclose(out3.astype(jnp.float32), ref3, atol=5e-2, rtol=5e-2)

    print("KERNEL_OK")
</pallas_src>

<mosaic_0001>
module attributes {stable_mosaic.version = 11 : i64} {
  func.func @_cln_kernel(%arg0: i32, %arg1: i32, %arg2: memref<1x4x128xf32, #tpu.memory_space<vmem>>, %arg3: memref<1x4x1xf32, #tpu.memory_space<vmem>>, %arg4: memref<1x4x1xf32, #tpu.memory_space<vmem>>, %arg5: memref<128x128xf32, #tpu.memory_space<vmem>>, %arg6: memref<1x4x128xf32, #tpu.memory_space<vmem>>, %arg7: memref<2x2x1xf32, #tpu.memory_space<vmem>>) attributes {dimension_semantics = [#tpu.dimension_semantics<parallel>, #tpu.dimension_semantics<arbitrary>], iteration_bounds = array<i64: 2, 1>, scalar_prefetch = 0 : i64, scratch_operands = 1 : i64, tpu.core_type = #tpu.core_type<tc>, window_params = [{transform_indices = @transform_0, window_bounds = array<i64: 1, 4, 128>}, {pipeline_mode = #tpu.pipeline_mode<synchronous>, transform_indices = @transform_1, window_bounds = array<i64: 1, 4, 1>}, {pipeline_mode = #tpu.pipeline_mode<synchronous>, transform_indices = @transform_2, window_bounds = array<i64: 1, 4, 1>}, {pipeline_mode = #tpu.pipeline_mode<synchronous>, transform_indices = @transform_3, window_bounds = array<i64: 128, 128>}, {transform_indices = @transform_4, window_bounds = array<i64: 1, 4, 128>}]} {
    %c0_i32 = arith.constant 0 : i32
    %0 = arith.cmpi eq, %arg1, %c0_i32 : i32
    %1 = arith.extui %0 : i1 to i32
    %c0_i32_0 = arith.constant 0 : i32
    %2 = arith.cmpi ne, %1, %c0_i32_0 : i32
    scf.if %2 {
      %cst_25 = arith.constant 0.000000e+00 : f32
      %66 = vector.broadcast %cst_25 : f32 to vector<2x1xf32>
      %67 = arith.index_cast %arg0 : i32 to index
      %c0_26 = arith.constant 0 : index
      %c0_27 = arith.constant 0 : index
      %68 = vector.load %arg7[%67, %c0_26, %c0_27] : memref<2x2x1xf32, #tpu.memory_space<vmem>>, vector<1x2x1xf32>
      %69 = vector.shape_cast %68 : vector<1x2x1xf32> to vector<2x1xf32>
      %70 = vector.shape_cast %66 : vector<2x1xf32> to vector<1x2x1xf32>
      tpu.vector_store %arg7[%67, %c0_26, %c0_27], %70 {strides = array<i32>} : memref<2x2x1xf32, #tpu.memory_space<vmem>>, vector<1x2x1xf32>,
    } else {
    }
    %c0 = arith.constant 0 : index
    %c0_1 = arith.constant 0 : index
    %c0_2 = arith.constant 0 : index
    %3 = vector.load %arg3[%c0, %c0_1, %c0_2] : memref<1x4x1xf32, #tpu.memory_space<vmem>>, vector<1x4x1xf32>
    %4 = vector.shape_cast %3 : vector<1x4x1xf32> to vector<4x1xf32>
    %c0_3 = arith.constant 0 : index
    %c0_4 = arith.constant 0 : index
    %c0_5 = arith.constant 0 : index
    %5 = vector.load %arg4[%c0_3, %c0_4, %c0_5] : memref<1x4x1xf32, #tpu.memory_space<vmem>>, vector<1x4x1xf32>
    %6 = vector.shape_cast %5 : vector<1x4x1xf32> to vector<4x1xf32>
    %c0_6 = arith.constant 0 : index
    %c0_7 = arith.constant 0 : index
    %7 = vector.load %arg5[%c0_6, %c0_7] : memref<128x128xf32, #tpu.memory_space<vmem>>, vector<128x128xf32>
    %c128_i32 = arith.constant 128 : i32
    %8 = arith.muli %arg1, %c128_i32 : i32
    %9 = arith.index_cast %arg0 : i32 to index
    %c0_8 = arith.constant 0 : index
    %c0_9 = arith.constant 0 : index
    %10 = vector.load %arg7[%9, %c0_8, %c0_9] : memref<2x2x1xf32, #tpu.memory_space<vmem>>, vector<1x2x1xf32>
    %11 = vector.shape_cast %10 : vector<1x2x1xf32> to vector<2x1xf32>
    %c0_i32_10 = arith.constant 0 : i32
    %c128_i32_11 = arith.constant 128 : i32
    %12 = arith.muli %c0_i32_10, %c128_i32_11 : i32
    %13 = tpu.assume_multiple %12, 128 : i32
    %c0_12 = arith.constant 0 : index
    %c0_13 = arith.constant 0 : index
    %14 = arith.index_cast %13 : i32 to index
    %15 = vector.load %arg2[%c0_12, %c0_13, %14] : memref<1x4x128xf32, #tpu.memory_space<vmem>>, vector<1x4x128xf32>
    %16 = vector.shape_cast %15 : vector<1x4x128xf32> to vector<4x128xf32>
    %cst = arith.constant dense<0.000000e+00> : vector<128xf32>
    %17 = vector.multi_reduction <add>, %16, %cst [0] : vector<4x128xf32> to vector<128xf32>
    %18 = vector.shape_cast %17 : vector<128xf32> to vector<1x128xf32>
    %19 = arith.mulf %16, %16 : vector<4x128xf32>
    %cst_14 = arith.constant dense<0.000000e+00> : vector<128xf32>
    %20 = vector.multi_reduction <add>, %19, %cst_14 [0] : vector<4x128xf32> to vector<128xf32>
    %21 = vector.shape_cast %20 : vector<128xf32> to vector<1x128xf32>
    %22 = tpu.concatenate %18, %21 in 0 : vector<1x128xf32>, vector<1x128xf32> -> vector<2x128xf32>
    %cst_15 = arith.constant dense<0.000000e+00> : vector<2x128xf32>
    %23 = tpu.matmul %22, %7, %cst_15 {dimension_numbers = #tpu.dot_dimension_numbers<[1], [0], [0], [1], [0, 0, 1, 1], [], []>} : vector<2x128xf32>, vector<128x128xf32>, vector<2x128xf32> -> vector<2x128xf32>
    %24 = vector.broadcast %11 : vector<2x1xf32> to vector<2x128xf32>
    %25 = arith.addf %23, %24 : vector<2x128xf32>
    %26 = vector.extract_strided_slice %25 {offsets = [0, 127], sizes = [2, 1], strides = [1, 1]} : vector<2x128xf32> to vector<2x1xf32>
    %27 = vector.extract_strided_slice %25 {offsets = [0, 0], sizes = [1, 128], strides = [1, 1]} : vector<2x128xf32> to vector<1x128xf32>
    %28 = vector.extract_strided_slice %25 {offsets = [1, 0], sizes = [1, 128], strides = [1, 1]} : vector<2x128xf32> to vector<1x128xf32>
    %29 = tpu.iota {dimensions = array<i32: 1>} : vector<1x128xi32>
    %30 = arith.addi %8, %13 : i32
    %c1_i32 = arith.constant 1 : i32
    %31 = arith.addi %30, %c1_i32 : i32
    %32 = vector.broadcast %31 : i32 to vector<1x128xi32>
    %33 = arith.addi %29, %32 : vector<1x128xi32>
    %34 = arith.sitofp %33 : vector<1x128xi32> to vector<1x128xf32>
    %cst_16 = arith.constant 4.000000e+00 : f32
    %35 = vector.broadcast %cst_16 : f32 to vector<1x128xf32>
    %36 = arith.mulf %34, %35 : vector<1x128xf32>
    %cst_17 = arith.constant 1.000000e+00 : f32
    %37 = vector.broadcast %cst_17 : f32 to vector<1x128xf32>
    %38 = arith.divf %37, %36 : vector<1x128xf32>
    %39 = arith.mulf %27, %38 : vector<1x128xf32>
    %cst_18 = arith.constant 2.000000e+00 : f32
    %40 = vector.broadcast %cst_18 : f32 to vector<1x128xf32>
    %41 = arith.mulf %40, %39 : vector<1x128xf32>
    %42 = arith.mulf %41, %27 : vector<1x128xf32>
    %43 = arith.subf %28, %42 : vector<1x128xf32>
    %44 = arith.mulf %43, %38 : vector<1x128xf32>
    %45 = arith.mulf %39, %39 : vector<1x128xf32>
    %46 = arith.addf %44, %45 : vector<1x128xf32>
    %cst_19 = arith.constant 1.1920929E-7 : f32
    %47 = vector.broadcast %cst_19 : f32 to vector<1x128xf32>
    %48 = arith.addf %46, %47 : vector<1x128xf32>
    %49 = math.rsqrt %48 : vector<1x128xf32>
    %50 = vector.broadcast %39 : vector<1x128xf32> to vector<4x128xf32>
    %51 = arith.subf %16, %50 : vector<4x128xf32>
    %52 = vector.broadcast %49 : vector<1x128xf32> to vector<4x128xf32>
    %53 = arith.mulf %51, %52 : vector<4x128xf32>
    %54 = vector.broadcast %4 : vector<4x1xf32> to vector<4x128xf32>
    %55 = arith.mulf %53, %54 : vector<4x128xf32>
    %56 = vector.broadcast %6 : vector<4x1xf32> to vector<4x128xf32>
    %57 = arith.addf %55, %56 : vector<4x128xf32>
    %c0_20 = arith.constant 0 : index
    %c0_21 = arith.constant 0 : index
    %58 = arith.index_cast %13 : i32 to index
    %59 = vector.load %arg6[%c0_20, %c0_21, %58] : memref<1x4x128xf32, #tpu.memory_space<vmem>>, vector<1x4x128xf32>
    %60 = vector.shape_cast %59 : vector<1x4x128xf32> to vector<4x128xf32>
    %61 = vector.shape_cast %57 : vector<4x128xf32> to vector<1x4x128xf32>
    tpu.vector_store %arg6[%c0_20, %c0_21, %58], %61 {strides = array<i32>} : memref<1x4x128xf32, #tpu.memory_space<vmem>>, vector<1x4x128xf32>,
    %c1_i32_22 = arith.constant 1 : i32
    %62 = arith.index_cast %arg0 : i32 to index
    %c0_23 = arith.constant 0 : index
    %c0_24 = arith.constant 0 : index
    %63 = vector.load %arg7[%62, %c0_23, %c0_24] : memref<2x2x1xf32, #tpu.memory_space<vmem>>, vector<1x2x1xf32>
    %64 = vector.shape_cast %63 : vector<1x2x1xf32> to vector<2x1xf32>
    %65 = vector.shape_cast %26 : vector<2x1xf32> to vector<1x2x1xf32>
    tpu.vector_store %arg7[%62, %c0_23, %c0_24], %65 {strides = array<i32>} : memref<2x2x1xf32, #tpu.memory_space<vmem>>, vector<1x2x1xf32>,
    return
  }
  func.func @transform_0(%arg0: i32, %arg1: i32) -> (i32, i32, i32) {
    %c0_i32 = arith.constant 0 : i32
    %c0_i32_0 = arith.constant 0 : i32
    return %arg0, %c0_i32, %arg1 : i32, i32, i32
  }
  func.func @transform_1(%arg0: i32, %arg1: i32) -> (i32, i32, i32) {
    %c0_i32 = arith.constant 0 : i32
    %c0_i32_0 = arith.constant 0 : i32
    %c0_i32_1 = arith.constant 0 : i32
    %c0_i32_2 = arith.constant 0 : i32
    return %c0_i32, %c0_i32_0, %c0_i32_1 : i32, i32, i32
  }
  func.func @transform_2(%arg0: i32, %arg1: i32) -> (i32, i32, i32) {
    %c0_i32 = arith.constant 0 : i32
    %c0_i32_0 = arith.constant 0 : i32
    %c0_i32_1 = arith.constant 0 : i32
    %c0_i32_2 = arith.constant 0 : i32
    return %c0_i32, %c0_i32_0, %c0_i32_1 : i32, i32, i32
  }
  func.func @transform_3(%arg0: i32, %arg1: i32) -> (i32, i32) {
    %c0_i32 = arith.constant 0 : i32
    %c0_i32_0 = arith.constant 0 : i32
    %c0_i32_1 = arith.constant 0 : i32
    return %c0_i32, %c0_i32_0 : i32, i32
  }
  func.func @transform_4(%arg0: i32, %arg1: i32) -> (i32, i32, i32) {
    %c0_i32 = arith.constant 0 : i32
    %c0_i32_0 = arith.constant 0 : i32
    return %arg0, %c0_i32, %arg1 : i32, i32, i32
  }
}

</mosaic_0001>

<llo_original>
// kernel: tpu_custom_call.1
$region0: #{tpu_custom_call.1}
  #allocation0 [shape = 'u32[]', space=smem, size = 0x4, offset = 0x4, fixed_abs, tag = 'smem constant byte address 0x4 - core index']
  #allocation1 [shape = 'u32[144,128]{1,0:T(1,128)}', space=vmem, size = 0x12000, scoped, tag = 'internal scratch']
  #allocation2 [shape = 'f32[2,2,1]{2,1,0:T(2,128)}', space=vmem, size = 0x800, scoped, tag = 'scratch operand']
  %s0 = inlined_call_operand.vmem [shape: f32[2,4,128], index: 0, kind: input, shape index: {}]
  %s1 = inlined_call_operand.vmem [shape: f32[1,4,1], index: 1, kind: input, shape index: {}]
  %s2 = inlined_call_operand.vmem [shape: f32[1,4,1], index: 2, kind: input, shape index: {}]
  %s3 = inlined_call_operand.hbm [shape: f32[128,128], index: 3, kind: input, shape index: {}]
  %s4 = inlined_call_operand.hbm [shape: f32[2,4,128], index: 4, kind: output, shape index: {}]
  %s5 = sld [smem:[#allocation0]]
  $region57: #{tpu_custom_call.1} parent=0
    _
  %s7 = ssub.s32 1, %s5
  %s8 = scalar_select 0, %s7, %s5
  $region1: #{tpu_custom_call.1} parent=0
    #allocation3 [shape = 'u8[65536]{0}', space=vmem, size = 0x10000, scoped, tag = 'input window, operand 3, single buffered']
    #allocation4 [shape = 's32[2]{0}', space=sflag, size = 0x8, scoped, tag = 'scoped memory for tpu_custom_call.1']
    #allocation5 [shape = 's32[2]{0}', space=sflag, size = 0x8, scoped, tag = 'scoped memory for tpu_custom_call.1']
    #allocation6 [shape = 'u8[4096]{0}', space=vmem, size = 0x1000, scoped, tag = 'output window, operand 0']
    %9 = vsyncpa [#allocation4], 0
    %10 = vsyncpa [#allocation5], 0
    %s11 = scalar_lea.sflag [#allocation5], 1
    %12 = vsyncpa %s11, 0
    loop: start=0, step=1, limit=4
    $region2: #{tpu_custom_call.1} parent=1 // loop_pre_header
      _
    $region3: #{tpu_custom_call.1} parent=1 // loop_header
      %s14 = sphi 0, %s18
      %p15 = scmp.ge.s32.totalorder %s14, 4
      %s21 = sphi 0, %s33
      %s22 = sphi 0, %s29
      %s23 = sphi 0, %s21
      %s24 = sphi 0, %s22
      %s25 = sphi 0, %s23
      %s26 = sphi 0, %s24
      %s38 = sphi 0, %s40
      %s41 = sphi 0, %s38
      %s42 = sphi 0, %s41
      %s58 = sphi 0, %s42
      %s62 = sphi 0, %s62
      %s64 = sphi 0, %s62
      %s65 = sphi 0, %s64
      %s79 = sphi 0, %s65
      %s83 = sphi 0, %s83
      %s85 = sphi 0, %s83
      %s86 = sphi 0, %s85
      %s100 = sphi 0, %s86
      %s104 = sphi 0, %s104
      %s106 = sphi 0, %s104
      %s107 = sphi 0, %s106
      %s121 = sphi 0, %s107
      %s129 = sphi 0, %s131
      %s132 = sphi 0, %s129
      %s133 = sphi 0, %s132
      %s149 = sphi 0, %s133
    $region4: #{tpu_custom_call.1} parent=1 // loop_header_branch
      %17 = sbr.rel (%p15) target = $region8
    $region5: #{tpu_custom_call.1} parent=1 // loop_body
      %s19 = ssub.s32 %s14, 1
      %s20 = ssub.s32 %s14, 2
      %s27 = sadd.s32 1, %s22
      %p28 = scmp.ge.s32.totalorder %s27, 1
      %s29 = scalar_select %p28, 0, %s27
      %s30 = sadd.s32 1, %s21
      %s31 = scalar_select %p28, %s30, %s21
      %p32 = scmp.ge.s32.totalorder %s31, 2
      %s33 = scalar_select %p32, 0, %s31
      %s34 = ssub.s32 %s21, %s33
      %s35 = ssub.s32 %s22, %s29
      %s36 = sor.u32 %s34, %s35
      %p37 = scmp.eq.s32.totalorder %s36, 0
      %s39 = sadd.s32 %s38, 1
      %s40 = scalar_select %p37, %s38, %s39
      %p43 = pneg %p37
      %p44 = scmp.eq.s32.totalorder %s14, 1
      %p45 = por %p43, %p44
      %p46 = scmp.ne.s32.totalorder %s38, %s41
      %p47 = scmp.eq.s32.totalorder %s14, 0
      %p48 = por %p46, %p47
      %p49 = scmp.ne.s32.totalorder %s38, %s41
      %p50 = scmp.eq.s32.totalorder %s19, 1
      %p51 = por %p49, %p50
      %p52 = scmp.ne.s32.totalorder %s41, %s42
      %p53 = scmp.eq.s32.totalorder %s19, 0
      %p54 = por %p52, %p53
      %p55 = scmp.ne.s32.totalorder %s41, %s42
      %p56 = scmp.eq.s32.totalorder %s20, 1
      %p57 = por %p55, %p56
      %p59 = scmp.ne.s32.totalorder %s42, %s58
      %p60 = scmp.eq.s32.totalorder %s20, 0
      %p61 = por %p59, %p60
      %s63 = sadd.s32 %s62, 1
      %p66 = scmp.eq.s32.totalorder %s14, 1
      %p67 = scmp.ne.s32.totalorder %s62, %s64
      %p68 = scmp.eq.s32.totalorder %s14, 0
      %p69 = por %p67, %p68
      %p70 = scmp.ne.s32.totalorder %s62, %s64
      %p71 = scmp.eq.s32.totalorder %s19, 1
      %p72 = por %p70, %p71
      %p73 = scmp.ne.s32.totalorder %s64, %s65
      %p74 = scmp.eq.s32.totalorder %s19, 0
      %p75 = por %p73, %p74
      %p76 = scmp.ne.s32.totalorder %s64, %s65
      %p77 = scmp.eq.s32.totalorder %s20, 1
      %p78 = por %p76, %p77
      %p80 = scmp.ne.s32.totalorder %s65, %s79
      %p81 = scmp.eq.s32.totalorder %s20, 0
      %p82 = por %p80, %p81
      %s84 = sadd.s32 %s83, 1
      %p87 = scmp.eq.s32.totalorder %s14, 1
      %p88 = scmp.ne.s32.totalorder %s83, %s85
      %p89 = scmp.eq.s32.totalorder %s14, 0
      %p90 = por %p88, %p89
      %p91 = scmp.ne.s32.totalorder %s83, %s85
      %p92 = scmp.eq.s32.totalorder %s19, 1
      %p93 = por %p91, %p92
      %p94 = scmp.ne.s32.totalorder %s85, %s86
      %p95 = scmp.eq.s32.totalorder %s19, 0
      %p96 = por %p94, %p95
      %p97 = scmp.ne.s32.totalorder %s85, %s86
      %p98 = scmp.eq.s32.totalorder %s20, 1
      %p99 = por %p97, %p98
      %p101 = scmp.ne.s32.totalorder %s86, %s100
      %p102 = scmp.eq.s32.totalorder %s20, 0
      %p103 = por %p101, %p102
      %s105 = sadd.s32 %s104, 1
      %p108 = scmp.eq.s32.totalorder %s14, 1
      %p109 = scmp.ne.s32.totalorder %s104, %s106
      %p110 = scmp.eq.s32.totalorder %s14, 0
      %p111 = por %p109, %p110
      %p112 = scmp.ne.s32.totalorder %s104, %s106
      %p113 = scmp.eq.s32.totalorder %s19, 1
      %p114 = por %p112, %p113
      %p115 = scmp.ne.s32.totalorder %s106, %s107
      %p116 = scmp.eq.s32.totalorder %s19, 0
      %p117 = por %p115, %p116
      %p118 = scmp.ne.s32.totalorder %s106, %s107
      %p119 = scmp.eq.s32.totalorder %s20, 1
      %p120 = por %p118, %p119
      %p122 = scmp.ne.s32.totalorder %s107, %s121
      %p123 = scmp.eq.s32.totalorder %s20, 0
      %p124 = por %p122, %p123
      %s125 = ssub.s32 %s21, %s33
      %s126 = ssub.s32 %s22, %s29
      %s127 = sor.u32 %s125, %s126
      %p128 = scmp.eq.s32.totalorder %s127, 0
      %s130 = sadd.s32 %s129, 1
      %s131 = scalar_select %p128, %s129, %s130
      %p134 = pneg %p128
      %p135 = scmp.eq.s32.totalorder %s14, 1
      %p136 = por %p134, %p135
      %p137 = scmp.ne.s32.totalorder %s129, %s132
      %p138 = scmp.eq.s32.totalorder %s14, 0
      %p139 = por %p137, %p138
      %p140 = scmp.ne.s32.totalorder %s129, %s132
      %p141 = scmp.eq.s32.totalorder %s19, 1
      %p142 = por %p140, %p141
      %p143 = scmp.ne.s32.totalorder %s132, %s133
      %p144 = scmp.eq.s32.totalorder %s19, 0
      %p145 = por %p143, %p144
      %p146 = scmp.ne.s32.totalorder %s132, %s133
      %p147 = scmp.eq.s32.totalorder %s20, 1
      %p148 = por %p146, %p147
      %p150 = scmp.ne.s32.totalorder %s133, %s149
      %p151 = scmp.eq.s32.totalorder %s20, 0
      %p152 = por %p150, %p151
      %p153 = scmp.le.s32.totalorder 1, %s14
      %p154 = scmp.lt.s32.totalorder %s14, 3
      %p155 = pnand %p153, %p154
      %p156 = pneg %p155
      // Predicated region
      $region9: #{tpu_custom_call.1} parent=5 // pred_check
        _
      $region10: #{tpu_custom_call.1} parent=5 // pred_check_branch
        %158 = sbr.rel (%p155) target = $region12
      $region11: #{tpu_custom_call.1} parent=5 // pred_region
        %s159 = ssub.s32 %s14, 1
        // Predicated region
        $region13: #{tpu_custom_call.1} parent=11 // pred_check
          %p160 = pneg %p75
        $region14: #{tpu_custom_call.1} parent=11 // pred_check_branch
          %162 = sbr.rel (%p160) target = $region16
        $region15: #{tpu_custom_call.1} parent=11 // pred_region
          _
        $region16: #{tpu_custom_call.1} parent=11 // pred_fallthru
          _
        // Predicated region
        $region17: #{tpu_custom_call.1} parent=11 // pred_check
          %p163 = pneg %p96
        $region18: #{tpu_custom_call.1} parent=11 // pred_check_branch
          %165 = sbr.rel (%p163) target = $region20
        $region19: #{tpu_custom_call.1} parent=11 // pred_region
          _
        $region20: #{tpu_custom_call.1} parent=11 // pred_fallthru
          _
        // Predicated region
        $region21: #{tpu_custom_call.1} parent=11 // pred_check
          %p166 = pneg %p117
        $region22: #{tpu_custom_call.1} parent=11 // pred_check_branch
          %168 = sbr.rel (%p166) target = $region24
        $region23: #{tpu_custom_call.1} parent=11 // pred_region
          %s170 = ssub.s32 2048, 2048
          %171 = vsyncadd [#allocation4], %s170
          %s172 = sshll.u32 [#allocation3], 4
          %s173 = int_to_ptr.vmem [resolvable:$true] %s172
          %178 = dma.hbm_to_vmem [thread:$0]  %s3, 2048, %s173, [#allocation4], 128, 128, 8
        $region24: #{tpu_custom_call.1} parent=11 // pred_fallthru
          _
      $region12: #{tpu_custom_call.1} parent=5 // pred_fallthru
        _
      %p179 = scmp.lt.s32.totalorder %s14, 2
      // Predicated region
      $region25: #{tpu_custom_call.1} parent=5 // pred_check
        %p180 = pneg %p179
      $region26: #{tpu_custom_call.1} parent=5 // pred_check_branch
        %182 = sbr.rel (%p180) target = $region28
      $region27: #{tpu_custom_call.1} parent=5 // pred_region
        // Predicated region
        $region29: #{tpu_custom_call.1} parent=27 // pred_check
          %p183 = pneg %p48
        $region30: #{tpu_custom_call.1} parent=27 // pred_check_branch
          %185 = sbr.rel (%p183) target = $region32
        $region31: #{tpu_custom_call.1} parent=27 // pred_region
          %p186 = scmp.lt.s32.totalorder %s21, 1
          %s187 = scalar_select %p186, %s21, 1
          %p188 = scmp.lt.s32.totalorder %s22, 0
          %s189 = scalar_select %p188, %s22, 0
          %s190 = sadd.s32 %s189, %s187
          %s191 = smul.addr %s190, 4
          %s192 = scalar_lea.vmem %s0, %s191
        $region32: #{tpu_custom_call.1} parent=27 // pred_fallthru
          _
      $region28: #{tpu_custom_call.1} parent=5 // pred_fallthru
        _
      %p193 = scmp.le.s32.totalorder 1, %s14
      %p194 = scmp.lt.s32.totalorder %s14, 3
      %p195 = pnand %p193, %p194
      %p196 = pneg %p195
      // Predicated region
      $region33: #{tpu_custom_call.1} parent=5 // pred_check
        _
      $region34: #{tpu_custom_call.1} parent=5 // pred_check_branch
        %198 = sbr.rel (%p195) target = $region36
      $region35: #{tpu_custom_call.1} parent=5 // pred_region
        %s199 = ssub.s32 %s14, 1
        // Predicated region
        $region37: #{tpu_custom_call.1} parent=35 // pred_check
          %p200 = pneg %p117
        $region38: #{tpu_custom_call.1} parent=35 // pred_check_branch
          %202 = sbr.rel (%p200) target = $region40
        $region39: #{tpu_custom_call.1} parent=35 // pred_region
          %203 = dma.done [#allocation4], 2048
        $region40: #{tpu_custom_call.1} parent=35 // pred_fallthru
          _
        %p204 = scmp.lt.s32.totalorder %s23, 1
        %s205 = scalar_select %p204, %s23, 1
        %p206 = scmp.lt.s32.totalorder %s24, 0
        %s207 = scalar_select %p206, %s24, 0
        %s208 = sadd.s32 %s207, %s205
        %s209 = smul.addr %s208, 4
        %s210 = scalar_lea.vmem %s0, %s209
        %p211 = pneg %p54
        %p212 = pneg %p51
        %p213 = pneg %p75
        %p214 = pneg %p72
        %p215 = pneg %p96
        %p216 = pneg %p93
        %p217 = pneg %p117
        %p218 = pneg %p114
        %p219 = pneg %p145
        %p220 = pneg %p142
        %s221 = sand.u32 %s132, 1
        %s222 = scalar_lea.sflag [#allocation5], %s221
        %s223 = sand.u32 %s132, 1
        %s224 = smul.addr %s223, 4
        %s225 = scalar_lea.vmem [#allocation6], %s224
        %p226 = scmp.lt.s32.totalorder %s23, 1
        %s227 = scalar_select %p226, %s23, 1
        %p228 = scmp.lt.s32.totalorder %s24, 0
        %s229 = scalar_select %p228, %s24, 0
        %s230 = sadd.s32 %s229, %s227
        %s231 = smul.addr %s230, 4
        %s232 = scalar_lea.vmem %s0, %s231
        %p233 = scmp.eq.s32.totalorder %s24, 0
        // Predicated region
        $region41: #{tpu_custom_call.1} parent=35 // pred_check
          %p234 = pneg %p233
        $region42: #{tpu_custom_call.1} parent=35 // pred_check_branch
          %236 = sbr.rel (%p234) target = $region44
        $region43: #{tpu_custom_call.1} parent=35 // pred_region
          %s237 = smul.u32 %s23, 2
          %s238 = scalar_lea.vmem [#allocation2], %s237
          %vm239 = vcmask 1024
          %240 = vst.msk [vmem:[%s238] sm:$0x3] %vm239, 0.0
        $region44: #{tpu_custom_call.1} parent=35 // pred_fallthru
          _
        %v241 = vld [vmem:[%s1] sm:$0xf]
        %v242 = vld [vmem:[%s2] sm:$0xf]
        %v243 = vld [vmem:[#allocation3] sm:$0xff]
        %v244 = vld [vmem:[#allocation3 + $0x8] sm:$0xff]
        %v245 = vld [vmem:[#allocation3 + $0x10] sm:$0xff]
        %v246 = vld [vmem:[#allocation3 + $0x18] sm:$0xff]
        %v247 = vld [vmem:[#allocation3 + $0x20] sm:$0xff]
        %v248 = vld [vmem:[#allocation3 + $0x28] sm:$0xff]
        %v249 = vld [vmem:[#allocation3 + $0x30] sm:$0xff]
        %v250 = vld [vmem:[#allocation3 + $0x38] sm:$0xff]
        %v251 = vld [vmem:[#allocation3 + $0x40] sm:$0xff]
        %v252 = vld [vmem:[#allocation3 + $0x48] sm:$0xff]
        %v253 = vld [vmem:[#allocation3 + $0x50] sm:$0xff]
        %v254 = vld [vmem:[#allocation3 + $0x58] sm:$0xff]
        %v255 = vld [vmem:[#allocation3 + $0x60] sm:$0xff]
        %v256 = vld [vmem:[#allocation3 + $0x68] sm:$0xff]
        %v257 = vld [vmem:[#allocation3 + $0x70] sm:$0xff]
        %v258 = vld [vmem:[#allocation3 + $0x78] sm:$0xff]
        %s259 = smul.u32 %s24, 128
        %s260 = smul.u32 %s23, 2
        %s261 = scalar_lea.vmem [#allocation2], %s260
        %v262 = vld [vmem:[%s261] sm:$0x3]
        %v263 = vld [vmem:[%s232] sm:$0xf]
        %vm264 = vcmask 1043456
        %v265 = vsel %vm264, %v263, 0.0
        %v266 = vrot.slane %v265, 4
        %v267 = vadd.f32 %v265, %v266
        %v268 = vrot.slane %v267, 2
        %v269 = vadd.f32 %v267, %v268
        %v270 = vrot.slane %v269, 1
        %v271 = vadd.f32 %v269, %v270
        %v272 = vmul.f32 %v263, %v263
        %v273 = vsel %vm264, %v272, 0.0
        %v274 = vrot.slane %v273, 4
        %v275 = vadd.f32 %v273, %v274
        %v276 = vrot.slane %v275, 2
        %v277 = vadd.f32 %v275, %v276
        %v278 = vrot.slane %v277, 1
        %v279 = vadd.f32 %v277, %v278
        %vm280 = vcmask 1040384
        %v281 = vsel %vm280, %v271, %v279
        %283 = vset.pattern.permute.xlu0 0
        %284 = vperm.xlu0 %283, %v262
        %v285 = vpop.permute.xlu0 %284
        %287 = vmatprep.subr.mxu0 0.0
        %288 = vmatpush1.msra.mxu0 %v258
        %289 = vmatprep.subr.mxu0 0.0
        %290 = vmatpush1.msra.mxu0 %v257
        %291 = vmatprep.subr.mxu0 0.0
        %292 = vmatpush1.msra.mxu0 %v256
        %293 = vmatprep.subr.mxu0 0.0
        %294 = vmatpush1.msra.mxu0 %v255
        %295 = vmatprep.subr.mxu0 0.0
        %296 = vmatpush1.msra.mxu0 %v254
        %297 = vmatprep.subr.mxu0 0.0
        %298 = vmatpush1.msra.mxu0 %v253
        %299 = vmatprep.subr.mxu0 0.0
        %300 = vmatpush1.msra.mxu0 %v252
        %301 = vmatprep.subr.mxu0 0.0
        %302 = vmatpush1.msra.mxu0 %v251
        %303 = vmatprep.subr.mxu0 0.0
        %304 = vmatpush1.msra.mxu0 %v250
        %305 = vmatprep.subr.mxu0 0.0
        %306 = vmatpush1.msra.mxu0 %v249
        %307 = vmatprep.subr.mxu0 0.0
        %308 = vmatpush1.msra.mxu0 %v248
        %309 = vmatprep.subr.mxu0 0.0
        %310 = vmatpush1.msra.mxu0 %v247
        %311 = vmatprep.subr.mxu0 0.0
        %312 = vmatpush1.msra.mxu0 %v246
        %313 = vmatprep.subr.mxu0 0.0
        %314 = vmatpush1.msra.mxu0 %v245
        %315 = vmatprep.subr.mxu0 0.0
        %316 = vmatpush1.msra.mxu0 %v244
        %317 = vmatprep.subr.mxu0 0.0
        %318 = vmatpush1.msra.mxu0 %v243
        %319 = vmatprep.subr.mxu0 0.0
        %320 = vmatpush2.msra.mxu0 0.0
        %321 = vmatprep.subr.mxu0 0.0
        %322 = vmatpush2.msra.mxu0 0.0
        %323 = vmatprep.subr.mxu0 0.0
        %324 = vmatpush2.msra.mxu0 0.0
        %325 = vmatprep.subr.mxu0 0.0
        %326 = vmatpush2.msra.mxu0 0.0
        %327 = vmatprep.subr.mxu0 0.0
        %328 = vmatpush2.msra.mxu0 0.0
        %329 = vmatprep.subr.mxu0 0.0
        %330 = vmatpush2.msra.mxu0 0.0
        %331 = vmatprep.subr.mxu0 0.0
        %332 = vmatpush2.msra.mxu0 0.0
        %333 = vmatprep.subr.mxu0 0.0
        %334 = vmatpush2.msra.mxu0 0.0
        %335 = vmatprep.subr.mxu0 0.0
        %336 = vmatpush2.msra.mxu0 0.0
        %337 = vmatprep.subr.mxu0 0.0
        %338 = vmatpush2.msra.mxu0 0.0
        %339 = vmatprep.subr.mxu0 0.0
        %340 = vmatpush2.msra.mxu0 0.0
        %341 = vmatprep.subr.mxu0 0.0
        %342 = vmatpush2.msra.mxu0 0.0
        %343 = vmatprep.subr.mxu0 0.0
        %344 = vmatpush2.msra.mxu0 0.0
        %345 = vmatprep.subr.mxu0 0.0
        %346 = vmatpush2.msra.mxu0 0.0
        %347 = vmatprep.subr.mxu0 0.0
        %348 = vmatpush2.msra.mxu0 0.0
        %349 = vmatprep.subr.mxu0 0.0
        %350 = vmatpush2.msra.mxu0 0.0
        %351 = vmatprep.mubr.f32.mxu0 0.0
        %352 = vmatmul.mubr.f32.gmra.mxu0 %v281
        %v353 = vpop.f32.mrf.mxu0
        %v354 = vadd.f32 %v285, %v353
        %v355 = vpop.f32.mrf.mxu0
        %356 = vdwg.mxu0
        %v357 = vlaneseq
        %v358 = vand.u32 %v357, 127
        %s359 = sadd.s32 %s259, 0
        %s360 = sadd.s32 %s359, 1
        %v361 = vstv %s360
        %v362 = vadd.s32 %v358, %v361
        %v363 = vcvt.s32.f32 %v362
        %v364 = vmul.f32 %v363, 4.0
        %v365 = vrcp.pop %v364
        %v366 = vmul.f32 1.0, %v365
        %v367 = vmul.f32 %v354, %v366
        %v368 = vmul.f32 %v367, 2.0
        %v369 = vmul.f32 %v368, %v354
        %v371 = vrot.slane %v369, 7
        %v373 = vsub.f32 %v354, %v371
        %v374 = vmul.f32 %v373, %v366
        %v375 = vmul.f32 %v367, %v367
        %v377 = vrot.slane %v375, 7
        %v379 = vadd.f32 %v374, %v377
        %v380 = vadd.f32 %v379, 1.1920929e-07
        %v381 = vrsqrt.pop %v380
        %v382 = vlaneseq
        %v383 = vshrl.u32 %v382, 7
        %v384 = vsub.s32 0, %v383
        %v385 = vrot.slane %v367, %v384
        %v386 = vsub.f32 %v263, %v385
        %v387 = vlaneseq
        %v388 = vshrl.u32 %v387, 7
        %v389 = vsub.s32 1, %v388
        %v390 = vrot.slane %v381, %v389
        %v391 = vmul.f32 %v386, %v390
        %393 = vset.pattern.permute.xlu0 0
        %394 = vperm.xlu0 %393, %v241
        %v395 = vpop.permute.xlu0 %394
        %v397 = vmul.f32 %v391, %v395
        %399 = vset.pattern.permute.xlu0 0
        %400 = vperm.xlu0 %399, %v242
        %v401 = vpop.permute.xlu0 %400
        %v403 = vadd.f32 %v397, %v401
        %404 = vst [vmem:[%s225] sm:$0xf] %v403
        %406 = vrot.lane.b32.xlu0 %v354, 1
        %v407 = vpop.permute.xlu0 %406
        %vm409 = vcmask 1024
        %410 = vst.msk [vmem:[%s261] sm:$0x3] %vm409, %v407
        %s411 = sand.u32 %s132, 1
        %s412 = scalar_lea.sflag [#allocation5], %s411
        %s413 = sand.u32 %s132, 1
        %s414 = smul.addr %s413, 4
        %s415 = scalar_lea.vmem [#allocation6], %s414
        // Predicated region
        $region45: #{tpu_custom_call.1} parent=35 // pred_check
          %p416 = pneg %p142
        $region46: #{tpu_custom_call.1} parent=35 // pred_check_branch
          %418 = sbr.rel (%p416) target = $region48
        $region47: #{tpu_custom_call.1} parent=35 // pred_region
          %s420 = ssub.s32 64, 64
          %421 = vsyncadd %s412, %s420
          %s422 = sadd.s32 %s24, %s23
          %s423 = smul.addr %s422, 64
          %s424 = scalar_lea.hbm %s4, %s423
          %s426 = sshll.u32 %s415, 4
          %s427 = int_to_ptr.vmem [resolvable:$true] %s426
          %429 = dma.vmem_to_hbm [thread:$0]  %s427, 64, %s424, %s412
        $region48: #{tpu_custom_call.1} parent=35 // pred_fallthru
          _
      $region36: #{tpu_custom_call.1} parent=5 // pred_fallthru
        _
      %p430 = scmp.le.s32.totalorder 2, %s14
      // Predicated region
      $region49: #{tpu_custom_call.1} parent=5 // pred_check
        %p431 = pneg %p430
      $region50: #{tpu_custom_call.1} parent=5 // pred_check_branch
        %433 = sbr.rel (%p431) target = $region52
      $region51: #{tpu_custom_call.1} parent=5 // pred_region
        %s434 = ssub.s32 %s14, 2
        // Predicated region
        $region53: #{tpu_custom_call.1} parent=51 // pred_check
          %p435 = pneg %p148
        $region54: #{tpu_custom_call.1} parent=51 // pred_check_branch
          %437 = sbr.rel (%p435) target = $region56
        $region55: #{tpu_custom_call.1} parent=51 // pred_region
          %s438 = sand.u32 %s133, 1
          %s439 = scalar_lea.sflag [#allocation5], %s438
          %s440 = sand.u32 %s133, 1
          %s441 = smul.addr %s440, 4
          %s442 = scalar_lea.vmem [#allocation6], %s441
          %443 = dma.done %s439, 64
        $region56: #{tpu_custom_call.1} parent=51 // pred_fallthru
          _
      $region52: #{tpu_custom_call.1} parent=5 // pred_fallthru
        _
    $region6: #{tpu_custom_call.1} parent=1 // loop_footer
      %s18 = sadd.s32 1, %s14
    $region7: #{tpu_custom_call.1} parent=1 // loop_footer_branch
      %13 = sbr.rel target = $region3
    $region8: #{tpu_custom_call.1} parent=1 // loop_exit
      _
    %444 = vsyncpa [#allocation4], 1
    %s445 = scalar_lea.sflag [#allocation4], 1
    %446 = vsyncpa %s445, 1
    %447 = vsyncpa [#allocation5], 1
    %s448 = scalar_lea.sflag [#allocation5], 1
    %449 = vsyncpa %s448, 1

</llo_original>
